<compile_context>
chip_gen: v5e
topology: v5e:2x2
jax: 0.10.0
libtpu: 0.0.40
codegen_flags: <defaults>
</compile_context>

<pallas_src>
import jax
import jax.numpy as jnp
from jax.experimental import pallas as pl
from jax.experimental.pallas import tpu as pltpu


# Below this element count a single unpipelined block is optimal (step overhead
# dominates); above it we switch to the tiled, lane-dense, grid path.
_SINGLE_BLOCK_MAX_ELEMS = 256 * 1024


def uniform_weight_kernel(scalar_ref, mask_ref, out_ref):
    """out = scalar * mask  (one VPU cast + multiply over the whole tile)."""
    s = scalar_ref[0]                                            # SMEM scalar read
    out_ref[...] = (mask_ref[...].astype(jnp.float32) * s).astype(out_ref.dtype)


def _pick_lane_width(total):
    """Largest lane-dense width (multiple of 128) that evenly divides total."""
    for w in (2048, 1024, 512, 256, 128):
        if total % w == 0 and total // w >= 8:
            return w
    return None


def uniform_weight_forward(
    attention_mask,
    scalar,
    *,
    out_dtype=jnp.float32,
    tile_rows=512,
    single_block_max_elems=_SINGLE_BLOCK_MAX_ELEMS,
):
    """Pallas equivalent of UniformWeightModel.forward.

    attention_mask: (B, S) int8 / int32 / bool (1 = real token, 0 = padding)
    scalar:         traced 0-d / 1-element array (the module's single parameter)
                    or a python float
    returns         (B, S) `out_dtype` weights == scalar * attention_mask
    """
    B, S = attention_mask.shape
    total = B * S
    scalar_arr = jnp.asarray(scalar, dtype=jnp.float32).reshape(1)
    smem_spec = pl.BlockSpec(memory_space=pltpu.MemorySpace.SMEM)

    lane_width = _pick_lane_width(total)

    # --- small path: one full block, no grid (zero pipelining overhead) -------
    if total <= single_block_max_elems or lane_width is None:
        return pl.pallas_call(
            uniform_weight_kernel,
            out_shape=jax.ShapeDtypeStruct((B, S), out_dtype),
            in_specs=[
                smem_spec,                                         # scalar param
                pl.BlockSpec(memory_space=pltpu.MemorySpace.VMEM), # full (B, S) mask
            ],
            out_specs=pl.BlockSpec(memory_space=pltpu.MemorySpace.VMEM),
        )(scalar_arr, attention_mask)

    # --- at-scale path: lane-dense slab + 1-D parallel grid -------------------
    rows = total // lane_width
    flat_mask = attention_mask.reshape(rows, lane_width)

    tr = max(8, (min(tile_rows, rows) // 8) * 8)      # (8,128)-aligned tile rows
    grid = (pl.cdiv(rows, tr),)

    out_flat = pl.pallas_call(
        uniform_weight_kernel,
        out_shape=jax.ShapeDtypeStruct((rows, lane_width), out_dtype),
        grid=grid,
        in_specs=[
            smem_spec,                                         # scalar, untiled SMEM
            pl.BlockSpec((tr, lane_width), lambda i: (i, 0)),  # mask tiles
        ],
        out_specs=pl.BlockSpec((tr, lane_width), lambda i: (i, 0)),
        compiler_params=pltpu.CompilerParams(
            dimension_semantics=("parallel",),   # shards the row axis across v7x's 2 TCs
        ),
    )(scalar_arr, flat_mask)
    return out_flat.reshape(B, S)


if __name__ == "__main__":
    key = jax.random.PRNGKey(0)
    k_ids, _ = jax.random.split(key, 2)

    init_scalar = 0.5                         # config.init_scalar (demo value)
    scalar_param = jnp.asarray(init_scalar, dtype=jnp.float32)  # traced, no recompiles

    # ---- small-shape check (single-block path), mask stored as int8 ----------
    B, S, V = 2, 128, 128
    x = jax.random.randint(k_ids, (B, S), 0, V, dtype=jnp.int32)  # unused by forward
    lens = jnp.array([96, 64], dtype=jnp.int32)                   # contiguous-prefix masks
    pos = jnp.arange(S, dtype=jnp.int32)[None, :]
    attention_mask = (pos < lens[:, None]).astype(jnp.int8)       # 1 B/elem input

    weights = uniform_weight_forward(attention_mask, scalar_param)
    jax.block_until_ready(weights)

    ref = jnp.float32(init_scalar) * attention_mask.astype(jnp.float32)
    assert weights.shape == (B, S) and weights.dtype == jnp.float32
    assert jnp.allclose(weights, ref), "small-path mismatch vs reference"

    # ---- grid-path check (forced): lane-dense tiled layout --------------------
    B2, S2 = 8, 4096
    lens2 = jnp.arange(1, B2 + 1, dtype=jnp.int32) * (S2 // (B2 + 1))
    pos2 = jnp.arange(S2, dtype=jnp.int32)[None, :]
    mask2 = (pos2 < lens2[:, None]).astype(jnp.int8)

    weights2 = uniform_weight_forward(
        mask2, scalar_param, tile_rows=8, single_block_max_elems=0
    )
    jax.block_until_ready(weights2)

    ref2 = jnp.float32(init_scalar) * mask2.astype(jnp.float32)
    assert weights2.shape == (B2, S2) and weights2.dtype == jnp.float32
    assert jnp.allclose(weights2, ref2), "grid-path mismatch vs reference"

    print("KERNEL_OK")
</pallas_src>

<mosaic_0001>
module attributes {stable_mosaic.version = 11 : i64} {
  func.func @uniform_weight_kernel(%arg0: memref<1xf32, #tpu.memory_space<smem>>, %arg1: memref<2x128xi8, #tpu.memory_space<vmem>>, %arg2: memref<2x128xf32, #tpu.memory_space<vmem>>) attributes {dimension_semantics = [], scalar_prefetch = 0 : i64, scratch_operands = 0 : i64, tpu.core_type = #tpu.core_type<tc>} {
    %c0 = arith.constant 0 : index
    %0 = memref.load %arg0[%c0] : memref<1xf32, #tpu.memory_space<smem>>
    %c0_0 = arith.constant 0 : index
    %c0_1 = arith.constant 0 : index
    %1 = vector.load %arg1[%c0_0, %c0_1] : memref<2x128xi8, #tpu.memory_space<vmem>>, vector<2x128xi8>
    %2 = arith.sitofp %1 : vector<2x128xi8> to vector<2x128xf32>
    %3 = vector.broadcast %0 : f32 to vector<2x128xf32>
    %4 = arith.mulf %2, %3 : vector<2x128xf32>
    %c0_2 = arith.constant 0 : index
    %c0_3 = arith.constant 0 : index
    %5 = vector.load %arg2[%c0_2, %c0_3] : memref<2x128xf32, #tpu.memory_space<vmem>>, vector<2x128xf32>
    tpu.vector_store %arg2[%c0_2, %c0_3], %4 {strides = array<i32>} : memref<2x128xf32, #tpu.memory_space<vmem>>, vector<2x128xf32>,
    return
  }
}

</mosaic_0001>

<llo_original>
// kernel: tpu_custom_call.1
$region0: #{tpu_custom_call.1}
  #allocation0 [shape = 'u32[]', space=smem, size = 0x4, offset = 0x4, fixed_abs, tag = 'smem constant byte address 0x4 - core index']
  #allocation1 [shape = 'u32[72,128]{1,0:T(1,128)}', space=vmem, size = 0x9000, scoped, tag = 'internal scratch']
  #allocation2 [shape = 'f32[1]{0:T(128)S(6)}', space=smem, size = 0x200, scoped, tag = 'scoped memory for tpu_custom_call.1']
  %s0 = inlined_call_operand.<no memory space> [shape: f32[1], index: 0, kind: input, shape index: {}]
  %s1 = inlined_call_operand.vmem [shape: s8[2,128], index: 1, kind: input, shape index: {}]
  %s2 = inlined_call_operand.hbm [shape: f32[2,128], index: 2, kind: output, shape index: {}]
  %s3 = sld [smem:[#allocation0]]
  $region18: #{tpu_custom_call.1} parent=0
    _
  %s5 = ssub.s32 1, %s3
  %s6 = scalar_select 0, %s5, %s3
  %7 = sst [smem:[#allocation2]] %s0
  $region1: #{tpu_custom_call.1} parent=0
    #allocation3 [shape = 'u8[1024]{0}', space=vmem, size = 0x400, scoped, tag = 'output window, operand 0, single buffered']
    #allocation4 [shape = 's32[1]{0}', space=sflag, size = 0x4, scoped, tag = 'scoped memory for tpu_custom_call.1']
    %8 = vsyncpa [#allocation4], 0
    // Predicated region
    $region2: #{tpu_custom_call.1} parent=1 // pred_check
      _
    $region3: #{tpu_custom_call.1} parent=1 // pred_check_branch
      %10 = sbr.rel (0) target = $region5
    $region4: #{tpu_custom_call.1} parent=1 // pred_region
      _
    $region5: #{tpu_custom_call.1} parent=1 // pred_fallthru
      _
    // Predicated region
    $region6: #{tpu_custom_call.1} parent=1 // pred_check
      _
    $region7: #{tpu_custom_call.1} parent=1 // pred_check_branch
      %12 = sbr.rel (0) target = $region9
    $region8: #{tpu_custom_call.1} parent=1 // pred_region
      _
    $region9: #{tpu_custom_call.1} parent=1 // pred_fallthru
      _
    %s13 = sld [smem:[#allocation2]]
    %v14 = vld [vmem:[%s1] sm:$0x1]
    %v15 = vunpack.c.0.s8 %v14
    %v16 = vcvt.s32.f32 %v15
    %v17 = vstv %s13
    %v18 = vmul.f32 %v16, %v17
    %19 = vst [vmem:[#allocation3] sm:$0x3] %v18
    // Predicated region
    $region10: #{tpu_custom_call.1} parent=1 // pred_check
      _
    $region11: #{tpu_custom_call.1} parent=1 // pred_check_branch
      %21 = sbr.rel (0) target = $region13
    $region12: #{tpu_custom_call.1} parent=1 // pred_region
      %23 = vsyncadd [#allocation4], 0
      %s25 = sshll.u32 [#allocation3], 4
      %s26 = int_to_ptr.vmem [resolvable:$true] %s25
      %s27 = sshll.u32 %s2, 4
      %s28 = int_to_ptr.hbm [resolvable:$true] %s27
      %30 = dma.vmem_to_hbm [thread:$0]  %s26, 32, %s28, [#allocation4]
    $region13: #{tpu_custom_call.1} parent=1 // pred_fallthru
      _
    // Predicated region
    $region14: #{tpu_custom_call.1} parent=1 // pred_check
      _
    $region15: #{tpu_custom_call.1} parent=1 // pred_check_branch
      %32 = sbr.rel (0) target = $region17
    $region16: #{tpu_custom_call.1} parent=1 // pred_region
      %34 = dma.done [#allocation4], 32
    $region17: #{tpu_custom_call.1} parent=1 // pred_fallthru
      _
    %35 = vsyncpa [#allocation4], 1

</llo_original>
